<compile_context>
chip_gen: v7x
topology: tpu7x:2x2x1
jax: 0.10.0
libtpu: 0.0.40
codegen_flags: <defaults>
</compile_context>

<pallas_src>
import jax
import jax.numpy as jnp
from jax.experimental import pallas as pl
from jax.experimental.pallas import tpu as pltpu

_LANE = 128


def _identity_copy_kernel(x_ref, o_ref):
    # The entire "forward" compute: copy the current VMEM tile.
    o_ref[...] = x_ref[...]


def _aliased_copy_2d(x2d, tile_rows):
    rows, cols = x2d.shape
    grid = (pl.cdiv(rows, tile_rows),)
    return pl.pallas_call(
        _identity_copy_kernel,
        out_shape=jax.ShapeDtypeStruct((rows, cols), x2d.dtype),
        grid=grid,
        in_specs=[pl.BlockSpec((tile_rows, cols), lambda i: (i, 0))],
        out_specs=pl.BlockSpec((tile_rows, cols), lambda i: (i, 0)),
        # Identity copy -> safe to write the output into the input's HBM buffer.
        input_output_aliases={0: 0},
        compiler_params=pltpu.CompilerParams(
            dimension_semantics=("parallel",),   # shards grid over v7x's 2 TCs
            vmem_limit_bytes=48 << 20,           # above 16/32 MiB scoped defaults,
                                                 # below v7x's 64 MiB physical
        ),
    )(x2d)


def model_module_forward(inputs, targets):
    """Pallas implementation of ModelModule.forward(inputs, targets).

    inputs:  [B, C, H, W] activations (any float/int dtype)
    targets: [B] integer class labels (passed through untouched)

    Returns (inputs_out, targets_out) — pass-through of both arguments.
    """
    orig_shape = inputs.shape
    dtype = inputs.dtype
    itemsize = jnp.dtype(dtype).itemsize
    # Native sublane tile: 8 rows for 32-bit, 16 for bf16, 32 for int8/fp8.
    sub = max(8, 32 // itemsize)
    total = inputs.size

    # Lane-dense slab width: large multiple of 128, shrunk only for tiny inputs.
    cols = 512
    while cols > _LANE and total < cols * sub:
        cols //= 2

    # Pad the flat element count so the slab is (rows, cols) with rows % sub == 0
    # -> every load/store is an unmasked, lane- and sublane-dense vld/vst.
    chunk = cols * sub
    padded_total = ((total + chunk - 1) // chunk) * chunk
    x_flat = inputs.reshape(-1)
    if padded_total != total:
        x_flat = jnp.pad(x_flat, (0, padded_total - total))
    rows = padded_total // cols
    x2d = x_flat.reshape(rows, cols)

    # ~4 MiB blocks: amortize per-grid-step overhead (~0.35 us) while keeping
    # double-buffered in+out VMEM resident bytes (~16 MiB) safe on every chip.
    target_bytes = 4 << 20
    tile_rows = max(sub, (target_bytes // (cols * itemsize)) // sub * sub)
    tile_rows = min(tile_rows, rows)
    # Give the v7x megacore (2 TensorCores) at least 2 grid steps when possible.
    if rows >= 2 * sub and pl.cdiv(rows, tile_rows) < 2:
        tile_rows = max(sub, ((rows // 2) // sub) * sub)

    out2d = _aliased_copy_2d(x2d, tile_rows)

    out_flat = out2d.reshape(-1)
    if padded_total != total:
        out_flat = out_flat[:total]
    inputs_out = out_flat.reshape(orig_shape)
    targets_out = targets  # glue: labels pass through unchanged
    return inputs_out, targets_out


if __name__ == "__main__":
    key = jax.random.PRNGKey(0)
    k_x, k_y = jax.random.split(key)

    # Small shapes consistent with a classification-style forward.
    B, C, H, W = 2, 4, 16, 16
    inputs = jax.random.normal(k_x, (B, C, H, W), dtype=jnp.float32)
    targets = jax.random.randint(k_y, (B,), 0, 10, dtype=jnp.int32)

    y_hat, y = model_module_forward(inputs, targets)
    jax.block_until_ready((y_hat, y))

    # Sanity check: pass-through semantics.
    assert y_hat.shape == inputs.shape and y_hat.dtype == inputs.dtype
    assert jnp.allclose(y_hat, inputs)
    assert jnp.array_equal(y, targets)

    print("KERNEL_OK")
</pallas_src>

<mosaic_0001>
module attributes {stable_mosaic.version = 11 : i64} {
  func.func @_identity_copy_kernel(%arg0: i32, %arg1: memref<8x256xf32, #tpu.memory_space<vmem>>, %arg2: memref<8x256xf32, #tpu.memory_space<vmem>>) attributes {dimension_semantics = [#tpu.dimension_semantics<parallel>], iteration_bounds = array<i64: 1>, scalar_prefetch = 0 : i64, scratch_operands = 0 : i64, tpu.core_type = #tpu.core_type<tc>, window_params = [{transform_indices = @transform_0, window_bounds = array<i64: 8, 256>}, {transform_indices = @transform_1, window_bounds = array<i64: 8, 256>}]} {
    %c0 = arith.constant 0 : index
    %c0_0 = arith.constant 0 : index
    %0 = vector.load %arg1[%c0, %c0_0] : memref<8x256xf32, #tpu.memory_space<vmem>>, vector<8x256xf32>
    %c0_1 = arith.constant 0 : index
    %c0_2 = arith.constant 0 : index
    %1 = vector.load %arg2[%c0_1, %c0_2] : memref<8x256xf32, #tpu.memory_space<vmem>>, vector<8x256xf32>
    tpu.vector_store %arg2[%c0_1, %c0_2], %0 {strides = array<i32>} : memref<8x256xf32, #tpu.memory_space<vmem>>, vector<8x256xf32>,
    return
  }
  func.func @transform_0(%arg0: i32) -> (i32, i32) {
    %c0_i32 = arith.constant 0 : i32
    %c0_i32_0 = arith.constant 0 : i32
    return %arg0, %c0_i32 : i32, i32
  }
  func.func @transform_1(%arg0: i32) -> (i32, i32) {
    %c0_i32 = arith.constant 0 : i32
    %c0_i32_0 = arith.constant 0 : i32
    return %arg0, %c0_i32 : i32, i32
  }
}

</mosaic_0001>

<llo_original>
// kernel: tpu_custom_call.1
$region0: #{tpu_custom_call.1}
  #allocation0 [shape = 'u32[]', space=smem, size = 0x4, offset = 0x4, fixed_abs, tag = 'smem constant byte address 0x4 - core index']
  #allocation1 [shape = 'u32[144,128]{1,0:T(1,128)}', space=vmem, size = 0x12000, scoped, tag = 'internal scratch']
  %s0 = inlined_call_operand.hbm [shape: f32[8,256], index: 0, kind: input, shape index: {}, may-alias: {0,1}]
  %s1 = inlined_call_operand.hbm [shape: f32[8,256], index: 1, kind: output, shape index: {}, may-alias: {0,1}]
  %s2 = sld [smem:[#allocation0]]
  $region18: #{tpu_custom_call.1} parent=0
    _
  %s4 = ssub.s32 1, %s2
  %s5 = scalar_select 0, %s4, %s2
  $region1: #{tpu_custom_call.1} parent=0
    #allocation2 [shape = 'u8[8192]{0}', space=vmem, size = 0x2000, scoped, tag = 'input window, operand 0, single buffered']
    #allocation3 [shape = 's32[1]{0}', space=sflag, size = 0x4, scoped, tag = 'scoped memory for tpu_custom_call.1']
    #allocation4 [shape = 's32[1]{0}', space=sflag, size = 0x4, scoped, tag = 'scoped memory for tpu_custom_call.1']
    #allocation5 [shape = 'u8[8192]{0}', space=vmem, size = 0x2000, scoped, tag = 'output window, operand 0, single buffered']
    %6 = vsyncpa [#allocation3], 0
    %7 = vsyncpa [#allocation4], 0
    // Predicated region
    $region2: #{tpu_custom_call.1} parent=1 // pred_check
      _
    $region3: #{tpu_custom_call.1} parent=1 // pred_check_branch
      %9 = sbr.rel (0) target = $region5
    $region4: #{tpu_custom_call.1} parent=1 // pred_region
      %s11 = ssub.s32 256, 256
      %12 = vsyncadd [#allocation3], %s11
      %s14 = sshll.u32 [#allocation2], 4
      %s15 = int_to_ptr.vmem [resolvable:$true] %s14
      %17 = dma.hbm_to_vmem [thread:$0]  %s0, 256, %s15, [#allocation3]
    $region5: #{tpu_custom_call.1} parent=1 // pred_fallthru
      _
    // Predicated region
    $region6: #{tpu_custom_call.1} parent=1 // pred_check
      _
    $region7: #{tpu_custom_call.1} parent=1 // pred_check_branch
      %19 = sbr.rel (0) target = $region9
    $region8: #{tpu_custom_call.1} parent=1 // pred_region
      %20 = dma.done [#allocation3], 256
    $region9: #{tpu_custom_call.1} parent=1 // pred_fallthru
      _
    %v21 = vld [vmem:[#allocation2] sm:$0xff]
    %v22 = vld [vmem:[#allocation2 + $0x8] sm:$0xff]
    %23 = vst [vmem:[#allocation5] sm:$0xff] %v21
    %24 = vst [vmem:[#allocation5 + $0x8] sm:$0xff] %v22
    // Predicated region
    $region10: #{tpu_custom_call.1} parent=1 // pred_check
      _
    $region11: #{tpu_custom_call.1} parent=1 // pred_check_branch
      %26 = sbr.rel (0) target = $region13
    $region12: #{tpu_custom_call.1} parent=1 // pred_region
      %s28 = ssub.s32 256, 256
      %29 = vsyncadd [#allocation4], %s28
      %s31 = sshll.u32 [#allocation5], 4
      %s32 = int_to_ptr.vmem [resolvable:$true] %s31
      %34 = dma.vmem_to_hbm [thread:$0]  %s32, 256, %s1, [#allocation4]
    $region13: #{tpu_custom_call.1} parent=1 // pred_fallthru
      _
    // Predicated region
    $region14: #{tpu_custom_call.1} parent=1 // pred_check
      _
    $region15: #{tpu_custom_call.1} parent=1 // pred_check_branch
      %36 = sbr.rel (0) target = $region17
    $region16: #{tpu_custom_call.1} parent=1 // pred_region
      %37 = dma.done [#allocation4], 256
    $region17: #{tpu_custom_call.1} parent=1 // pred_fallthru
      _
    %38 = vsyncpa [#allocation3], 1
    %39 = vsyncpa [#allocation4], 1

</llo_original>
